<compile_context>
chip_gen: v7x
topology: tpu7x:2x2x1
jax: 0.10.0
libtpu: 0.0.40
codegen_flags: <defaults>
</compile_context>

<pallas_src>
import functools

import jax
import jax.numpy as jnp
from jax.experimental import pallas as pl
from jax.experimental.pallas import tpu as pltpu


def _round_up(x, m):
    return ((x + m - 1) // m) * m


# --------------------------------------------------------------------------- kernel ----

def _boltzmann_kernel(s_ref, fmm_ref, xi_ref, base_ref, out_ref, acc_ref, *, dt):
    """One (row-tile i, contraction-tile k) grid step.

    acc[i] += S_off[i, k] @ f[k]                    (MXU, f32 accumulation)
    at the last k:
      out[i] = max(base[i] - dt * xi * acc[i], 0)   (f32 VPU epilogue)
    """
    k = pl.program_id(1)

    @pl.when(k == 0)
    def _init():
        acc_ref[...] = jnp.zeros_like(acc_ref)

    acc_ref[...] += jnp.dot(s_ref[...], fmm_ref[...],
                            preferred_element_type=jnp.float32)

    @pl.when(k == pl.num_programs(1) - 1)
    def _finalize():
        f_new = base_ref[...] - dt * (xi_ref[...] * acc_ref[...])
        out_ref[...] = jnp.maximum(f_new, 0.0)


# ------------------------------------------------------------------ tiling / VMEM glue --

def _per_iter_vmem_bytes(tm, tk, Qp, mm_item):
    return (2 * tm * tk * mm_item      # S_off tiles (double-buffered, dominant stream)
            + 2 * tk * Qp * mm_item    # f contraction tiles
            + 2 * tm * Qp * 4          # base row tiles (f32)
            + 2 * tm * Qp * 4          # output row tiles (f32)
            + tm * Qp * 4              # f32 accumulator scratch
            + 4 * 8 * 128 * 4)         # xi + small slack


def _pick_tiles(Np, Qp, mm_item, budget, tm_target, tk_target):
    """Largest tiles (preferring fewest K steps) that divide Np and fit the VMEM budget."""
    tk_cands = [d for d in range(128, Np + 1, 128) if Np % d == 0]
    tm_cands = [d for d in range(8, Np + 1, 8) if Np % d == 0]
    for tk in sorted(tk_cands, reverse=True):
        if tk > tk_target:
            continue
        fitting = [tm for tm in tm_cands
                   if tm <= tm_target
                   and _per_iter_vmem_bytes(tm, tk, Qp, mm_item) <= budget]
        if not fitting:
            continue
        best = max(fitting)
        # v7x: 2 TensorCores shard the "parallel" row axis -> prefer an even number of row
        # tiles (no tail tile), unless that would cost more than 2x in tile size.
        even = [tm for tm in fitting if Np // tm == 1 or (Np // tm) % 2 == 0]
        if even and max(even) * 2 >= best:
            best = max(even)
        return best, tk
    return 8, 128   # minimal legal tiles; only reached if the budget is absurdly small


# ------------------------------------------------------------------ per-graph operator --

def build_transport_operator(src, dst, weight, num_nodes):
    """Fold the DGL message passing into one dense linear operator. Build ONCE per graph.

    Returns (S_off, diag_S): S_off is S = A + A^T - diag(rowsum_A + colsum_A) with its
    diagonal zeroed (streamed through the MXU, may be cast to bf16), diag_S is S's diagonal
    kept in f32 so the dominant -deg*f term stays exact.  Self-loop safe.
    """
    N = int(num_nodes)
    weight = weight.astype(jnp.float32)
    out_deg = jnp.zeros((N,), jnp.float32).at[src].add(1.0)
    coef = weight / out_deg[src]                  # out_deg[src] >= 1 by construction
    A = jnp.zeros((N, N), jnp.float32).at[src, dst].add(coef)
    S0 = A + A.T
    deg = jnp.sum(S0, axis=1)                     # rowsum_A + colsum_A
    diag_S = jnp.diagonal(S0) - deg               # diagonal of S
    idx = jnp.arange(N)
    S_off = S0.at[idx, idx].set(0.0)              # off-diagonal part of S
    # TODO(synk): for genuinely sparse graphs (E << N^2) replace the dense-S formulation
    # with a block-sparse / scalar-prefetch gather kernel (O(E*Q) bytes per step).
    return S_off, diag_S


# ------------------------------------------------------------------------- update call --

def boltzmann_update(S_off, diag_S, f, collision, source, xi, dt=0.1, *,
                     matmul_dtype=jnp.bfloat16, block_rows=512, block_k=2048):
    """Pallas BoltzmannUpdater.forward given a prebuilt transport operator.

    f, collision, source : [N, Q]; xi : [Q]; (S_off, diag_S) from build_transport_operator.
    matmul_dtype: dtype of the MXU operands for the dominant S_off stream (bf16 halves HBM
    traffic; the diagonal/degree term and the whole epilogue stay f32).
    block_rows / block_k: tile-size targets; actual tiles are capped by the per-chip VMEM
    budget and rounded to divisors of the padded N.
    """
    N, Q = f.shape
    dt = float(dt)
    f = f.astype(jnp.float32)
    collision = collision.astype(jnp.float32)
    source = source.astype(jnp.float32)
    xi = xi.astype(jnp.float32)
    diag_S = diag_S.astype(jnp.float32)

    # torch.clamp(f, min=0) happens before the transport term in the reference module.
    f_pos = jnp.maximum(f, 0.0)
    # Fold everything except the off-diagonal matmul into ONE f32 row operand (exact):
    #   f_new = max(base - dt * xi * (S_off @ f_pos), 0)
    base = f_pos + dt * (collision + source) - dt * (xi[None, :] * (diag_S[:, None] * f_pos))

    mm_item = jnp.dtype(matmul_dtype).itemsize
    Qp = _round_up(Q, 128)            # lane-dense, unmasked stores
    Np = _round_up(N, 128)            # full MXU contraction passes

    # Per-chip VMEM budget (v5e/v6e: 128 MiB, v7x: 64 MiB per TensorCore).
    try:
        vmem_cap = int(pltpu.get_tpu_info().vmem_capacity_bytes)
    except Exception:
        vmem_cap = 64 * (1 << 20)     # conservative (v7x per-core) fallback
    budget = int(vmem_cap * 0.6)      # headroom for compiler scratch / semaphores
    tm, tk = _pick_tiles(Np, Qp, mm_item, budget, block_rows, min(block_k, Np))
    grid = (Np // tm, Np // tk)

    def pad2(x, r, c):
        return jnp.pad(x, ((0, r - x.shape[0]), (0, c - x.shape[1])))

    S_p = pad2(S_off, Np, Np).astype(matmul_dtype)     # dominant stream, (tm, tk) tiles
    fmm_p = pad2(f_pos, Np, Qp).astype(matmul_dtype)   # contraction operand, (tk, Qp) tiles
    base_p = pad2(base, Np, Qp)                        # single f32 row operand
    xi_p = pad2(xi[None, :], 1, Qp)                    # resident (1, Qp)

    vmem_limit = int(min(vmem_cap * 9 // 10,
                         max(2 * _per_iter_vmem_bytes(tm, tk, Qp, mm_item), 32 << 20)))

    cost = pl.CostEstimate(
        flops=2 * Np * Np * Qp,
        transcendentals=0,
        bytes_accessed=Np * Np * mm_item + Np * Qp * (mm_item + 8) + Qp * 4,
    )

    out = pl.pallas_call(
        functools.partial(_boltzmann_kernel, dt=dt),
        out_shape=jax.ShapeDtypeStruct((Np, Qp), jnp.float32),
        grid=grid,
        in_specs=[
            pl.BlockSpec((tm, tk), lambda i, k: (i, k)),   # S_off tile   (dominant stream)
            pl.BlockSpec((tk, Qp), lambda i, k: (k, 0)),   # f contraction tile
            pl.BlockSpec((1, Qp), lambda i, k: (0, 0)),    # xi (stays resident)
            pl.BlockSpec((tm, Qp), lambda i, k: (i, 0)),   # base rows (fetched once per i)
        ],
        out_specs=pl.BlockSpec((tm, Qp), lambda i, k: (i, 0)),
        scratch_shapes=[pltpu.VMEM((tm, Qp), jnp.float32)],
        compiler_params=pltpu.CompilerParams(
            dimension_semantics=("parallel", "arbitrary"),   # rows across TCs, K sequential
            vmem_limit_bytes=vmem_limit,
        ),
        cost_estimate=cost,
    )(S_p, fmm_p, xi_p, base_p)
    return out[:N, :Q]


def boltzmann_update_from_edges(src, dst, weight, f, collision, source, xi, dt=0.1, **kw):
    """Convenience one-shot call; for repeated timesteps hoist build_transport_operator."""
    S_off, diag_S = build_transport_operator(src, dst, weight, f.shape[0])
    return boltzmann_update(S_off, diag_S, f, collision, source, xi, dt, **kw)


# --------------------------------------------------------------------------- reference --

def boltzmann_reference(src, dst, weight, f, collision, source, xi, dt=0.1):
    """Edge-wise pure-JAX reference matching the DGL message passing exactly."""
    f = jnp.maximum(f, 0.0)
    N = f.shape[0]
    out_deg = jnp.zeros((N,), jnp.float32).at[src].add(1.0)
    diff = f[dst] - f[src]                                   # [E, Q]
    coef = (weight / out_deg[src])[:, None]                  # w(u->v)/out_deg(u)
    msg = coef * xi[None, :] * diff                          # [E, Q]
    inflow = jnp.zeros_like(f).at[dst].add(msg)              # sum over incoming edges
    outflow = jnp.zeros_like(f).at[src].add(msg)             # sum over outgoing edges
    transport = outflow - inflow
    return jnp.maximum(f - dt * (transport - collision - source), 0.0)


if __name__ == "__main__":
    key = jax.random.PRNGKey(0)
    dt = 0.1

    # ---- small test: N=16 nodes, Q=8 velocities, f32 operands, grid=(1,1) ----
    # (tolerance 1e-2: the MXU's default f32 matmul precision may use bf16 passes; the
    #  dense-S fold itself is algorithmically exact.)
    N, Q = 16, 8
    xi = jnp.linspace(-1.0, 1.0, Q, dtype=jnp.float32)
    ring_src = jnp.arange(N, dtype=jnp.int32)
    ring_dst = (ring_src + 1) % N
    extra_src = jnp.array([0, 3, 5, 7, 9, 12, 14, 2], dtype=jnp.int32)
    extra_dst = jnp.array([8, 11, 1, 15, 4, 6, 10, 13], dtype=jnp.int32)
    src = jnp.concatenate([ring_src, extra_src])
    dst = jnp.concatenate([ring_dst, extra_dst])
    E = src.shape[0]

    k_w, k_f, k_c, k_s, k2 = jax.random.split(key, 5)
    weight = jax.random.uniform(k_w, (E,), jnp.float32, minval=0.1, maxval=1.0)
    f_distribution = jax.random.normal(k_f, (N, Q), jnp.float32)
    collision_term = 0.1 * jax.random.normal(k_c, (N, Q), jnp.float32)
    source_term = 0.05 * jax.random.normal(k_s, (N, Q), jnp.float32)

    out = boltzmann_update_from_edges(src, dst, weight, f_distribution, collision_term,
                                      source_term, xi, dt, matmul_dtype=jnp.float32)
    out = jax.block_until_ready(out)
    ref = boltzmann_reference(src, dst, weight, f_distribution, collision_term,
                              source_term, xi, dt)
    assert out.shape == (N, Q)
    assert jnp.allclose(out, ref, rtol=1e-2, atol=1e-2), "f32 Pallas output mismatch"

    # ---- medium test: N=520 (Np=640). Exercises row tiling, bf16 off-diagonal S with the
    #      exact f32 diagonal folded into `base`, and a K-blocked run (grid_k > 1) that
    #      exercises the f32-accumulator init/finalize path. Operator built once (hoisted).
    N2, Q2 = 520, 8
    xi2 = jnp.linspace(-1.0, 1.0, Q2, dtype=jnp.float32)
    ring_src2 = jnp.arange(N2, dtype=jnp.int32)
    ring_dst2 = (ring_src2 + 1) % N2
    k_es, k_ed, k_w2, k_f2, k_c2, k_s2 = jax.random.split(k2, 6)
    extra_src2 = jax.random.randint(k_es, (4 * N2,), 0, N2, dtype=jnp.int32)
    extra_dst2 = jax.random.randint(k_ed, (4 * N2,), 0, N2, dtype=jnp.int32)
    src2 = jnp.concatenate([ring_src2, extra_src2])
    dst2 = jnp.concatenate([ring_dst2, extra_dst2])
    E2 = src2.shape[0]
    weight2 = jax.random.uniform(k_w2, (E2,), jnp.float32, minval=0.1, maxval=1.0)
    f2 = jax.random.normal(k_f2, (N2, Q2), jnp.float32)
    c2 = 0.1 * jax.random.normal(k_c2, (N2, Q2), jnp.float32)
    s2 = 0.05 * jax.random.normal(k_s2, (N2, Q2), jnp.float32)

    S_off2, diag_S2 = build_transport_operator(src2, dst2, weight2, N2)  # once per graph
    ref2 = boltzmann_reference(src2, dst2, weight2, f2, c2, s2, xi2, dt)

    out2_f32 = boltzmann_update(S_off2, diag_S2, f2, c2, s2, xi2, dt,
                                matmul_dtype=jnp.float32)
    out2_f32 = jax.block_until_ready(out2_f32)
    assert jnp.allclose(out2_f32, ref2, rtol=1e-2, atol=1e-2), "tiled f32 mismatch"

    out2_bf16 = boltzmann_update(S_off2, diag_S2, f2, c2, s2, xi2, dt,
                                 matmul_dtype=jnp.bfloat16)
    out2_bf16 = jax.block_until_ready(out2_bf16)
    assert jnp.allclose(out2_bf16, ref2, rtol=2e-2, atol=2e-2), "bf16 S mismatch"

    out2_kblk = boltzmann_update(S_off2, diag_S2, f2, c2, s2, xi2, dt,
                                 matmul_dtype=jnp.bfloat16, block_rows=128, block_k=128)
    out2_kblk = jax.block_until_ready(out2_kblk)
    assert jnp.allclose(out2_kblk, ref2, rtol=2e-2, atol=2e-2), "K-blocked mismatch"

    print("KERNEL_OK")
</pallas_src>

<mosaic_0001>
module attributes {stable_mosaic.version = 11 : i64} {
  func.func @_boltzmann_kernel(%arg0: i32, %arg1: i32, %arg2: memref<128x128xf32, #tpu.memory_space<vmem>>, %arg3: memref<128x128xf32, #tpu.memory_space<vmem>>, %arg4: memref<1x128xf32, #tpu.memory_space<vmem>>, %arg5: memref<128x128xf32, #tpu.memory_space<vmem>>, %arg6: memref<128x128xf32, #tpu.memory_space<vmem>>, %arg7: memref<128x128xf32, #tpu.memory_space<vmem>>) attributes {dimension_semantics = [#tpu.dimension_semantics<parallel>, #tpu.dimension_semantics<arbitrary>], iteration_bounds = array<i64: 1, 1>, scalar_prefetch = 0 : i64, scratch_operands = 1 : i64, tpu.core_type = #tpu.core_type<tc>, window_params = [{transform_indices = @transform_0, window_bounds = array<i64: 128, 128>}, {transform_indices = @transform_1, window_bounds = array<i64: 128, 128>}, {pipeline_mode = #tpu.pipeline_mode<synchronous>, transform_indices = @transform_2, window_bounds = array<i64: 1, 128>}, {transform_indices = @transform_3, window_bounds = array<i64: 128, 128>}, {transform_indices = @transform_4, window_bounds = array<i64: 128, 128>}]} {
    %c0_i32 = arith.constant 0 : i32
    %0 = arith.cmpi eq, %arg1, %c0_i32 : i32
    %1 = arith.extui %0 : i1 to i32
    %c0_i32_0 = arith.constant 0 : i32
    %2 = arith.cmpi ne, %1, %c0_i32_0 : i32
    scf.if %2 {
      %cst_10 = arith.constant 0.000000e+00 : f32
      %12 = vector.broadcast %cst_10 : f32 to vector<128x128xf32>
      %c0_11 = arith.constant 0 : index
      %c0_12 = arith.constant 0 : index
      %13 = vector.load %arg7[%c0_11, %c0_12] : memref<128x128xf32, #tpu.memory_space<vmem>>, vector<128x128xf32>
      tpu.vector_store %arg7[%c0_11, %c0_12], %12 {strides = array<i32>} : memref<128x128xf32, #tpu.memory_space<vmem>>, vector<128x128xf32>,
    } else {
    }
    %c0 = arith.constant 0 : index
    %c0_1 = arith.constant 0 : index
    %3 = vector.load %arg7[%c0, %c0_1] : memref<128x128xf32, #tpu.memory_space<vmem>>, vector<128x128xf32>
    %c0_2 = arith.constant 0 : index
    %c0_3 = arith.constant 0 : index
    %4 = vector.load %arg2[%c0_2, %c0_3] : memref<128x128xf32, #tpu.memory_space<vmem>>, vector<128x128xf32>
    %c0_4 = arith.constant 0 : index
    %c0_5 = arith.constant 0 : index
    %5 = vector.load %arg3[%c0_4, %c0_5] : memref<128x128xf32, #tpu.memory_space<vmem>>, vector<128x128xf32>
    %cst = arith.constant dense<0.000000e+00> : vector<128x128xf32>
    %6 = tpu.matmul %4, %5, %cst {dimension_numbers = #tpu.dot_dimension_numbers<[1], [0], [0], [1], [0, 0, 1, 1], [], []>} : vector<128x128xf32>, vector<128x128xf32>, vector<128x128xf32> -> vector<128x128xf32>
    %7 = arith.addf %3, %6 : vector<128x128xf32>
    %c0_6 = arith.constant 0 : index
    %c0_7 = arith.constant 0 : index
    %8 = vector.load %arg7[%c0_6, %c0_7] : memref<128x128xf32, #tpu.memory_space<vmem>>, vector<128x128xf32>
    tpu.vector_store %arg7[%c0_6, %c0_7], %7 {strides = array<i32>} : memref<128x128xf32, #tpu.memory_space<vmem>>, vector<128x128xf32>,
    %c0_i32_8 = arith.constant 0 : i32
    %9 = arith.cmpi eq, %arg1, %c0_i32_8 : i32
    %10 = arith.extui %9 : i1 to i32
    %c0_i32_9 = arith.constant 0 : i32
    %11 = arith.cmpi ne, %10, %c0_i32_9 : i32
    scf.if %11 {
      %c0_10 = arith.constant 0 : index
      %c0_11 = arith.constant 0 : index
      %12 = vector.load %arg5[%c0_10, %c0_11] : memref<128x128xf32, #tpu.memory_space<vmem>>, vector<128x128xf32>
      %c0_12 = arith.constant 0 : index
      %c0_13 = arith.constant 0 : index
      %13 = vector.load %arg4[%c0_12, %c0_13] : memref<1x128xf32, #tpu.memory_space<vmem>>, vector<1x128xf32>
      %c0_14 = arith.constant 0 : index
      %c0_15 = arith.constant 0 : index
      %14 = vector.load %arg7[%c0_14, %c0_15] : memref<128x128xf32, #tpu.memory_space<vmem>>, vector<128x128xf32>
      %15 = vector.broadcast %13 : vector<1x128xf32> to vector<128x128xf32>
      %16 = arith.mulf %15, %14 : vector<128x128xf32>
      %cst_16 = arith.constant 1.000000e-01 : f32
      %17 = vector.broadcast %cst_16 : f32 to vector<128x128xf32>
      %18 = arith.mulf %17, %16 : vector<128x128xf32>
      %19 = arith.subf %12, %18 : vector<128x128xf32>
      %cst_17 = arith.constant 0.000000e+00 : f32
      %20 = vector.broadcast %cst_17 : f32 to vector<128x128xf32>
      %21 = arith.maximumf %19, %20 : vector<128x128xf32>
      %c0_18 = arith.constant 0 : index
      %c0_19 = arith.constant 0 : index
      %22 = vector.load %arg6[%c0_18, %c0_19] : memref<128x128xf32, #tpu.memory_space<vmem>>, vector<128x128xf32>
      tpu.vector_store %arg6[%c0_18, %c0_19], %21 {strides = array<i32>} : memref<128x128xf32, #tpu.memory_space<vmem>>, vector<128x128xf32>,
    } else {
    }
    return
  }
  func.func @transform_0(%arg0: i32, %arg1: i32) -> (i32, i32) {
    %c0_i32 = arith.constant 0 : i32
    return %arg0, %arg1 : i32, i32
  }
  func.func @transform_1(%arg0: i32, %arg1: i32) -> (i32, i32) {
    %c0_i32 = arith.constant 0 : i32
    %c0_i32_0 = arith.constant 0 : i32
    return %arg1, %c0_i32 : i32, i32
  }
  func.func @transform_2(%arg0: i32, %arg1: i32) -> (i32, i32) {
    %c0_i32 = arith.constant 0 : i32
    %c0_i32_0 = arith.constant 0 : i32
    %c0_i32_1 = arith.constant 0 : i32
    return %c0_i32, %c0_i32_0 : i32, i32
  }
  func.func @transform_3(%arg0: i32, %arg1: i32) -> (i32, i32) {
    %c0_i32 = arith.constant 0 : i32
    %c0_i32_0 = arith.constant 0 : i32
    return %arg0, %c0_i32 : i32, i32
  }
  func.func @transform_4(%arg0: i32, %arg1: i32) -> (i32, i32) {
    %c0_i32 = arith.constant 0 : i32
    %c0_i32_0 = arith.constant 0 : i32
    return %arg0, %c0_i32 : i32, i32
  }
}

</mosaic_0001>

<llo_original>
// kernel: tpu_custom_call.1
$region0: #{tpu_custom_call.1}
  #allocation0 [shape = 'u32[]', space=smem, size = 0x4, offset = 0x4, fixed_abs, tag = 'smem constant byte address 0x4 - core index']
  #allocation1 [shape = 'u32[144,128]{1,0:T(1,128)}', space=vmem, size = 0x12000, scoped, tag = 'internal scratch']
  #allocation2 [shape = 'f32[128,128]{1,0:T(8,128)}', space=vmem, size = 0x10000, scoped, tag = 'scratch operand']
  %s0 = inlined_call_operand.hbm [shape: f32[128,128], index: 0, kind: input, shape index: {}]
  %s1 = inlined_call_operand.hbm [shape: f32[128,128], index: 1, kind: input, shape index: {}]
  %s2 = inlined_call_operand.vmem [shape: f32[1,128], index: 2, kind: input, shape index: {}]
  %s3 = inlined_call_operand.hbm [shape: f32[128,128], index: 3, kind: input, shape index: {}]
  %s4 = inlined_call_operand.hbm [shape: f32[128,128], index: 4, kind: output, shape index: {}]
  %s5 = sld [smem:[#allocation0]]
  $region46: #{tpu_custom_call.1} parent=0
    _
  %s7 = ssub.s32 1, %s5
  %s8 = scalar_select 0, %s7, %s5
  $region1: #{tpu_custom_call.1} parent=0
    #allocation3 [shape = 'u8[65536]{0}', space=vmem, size = 0x10000, scoped, tag = 'input window, operand 0, single buffered']
    #allocation4 [shape = 's32[1]{0}', space=sflag, size = 0x4, scoped, tag = 'scoped memory for tpu_custom_call.1']
    #allocation5 [shape = 's32[1]{0}', space=sflag, size = 0x4, scoped, tag = 'scoped memory for tpu_custom_call.1']
    #allocation6 [shape = 'u8[65536]{0}', space=vmem, size = 0x10000, scoped, tag = 'input window, operand 1, single buffered']
    #allocation7 [shape = 's32[1]{0}', space=sflag, size = 0x4, scoped, tag = 'scoped memory for tpu_custom_call.1']
    #allocation8 [shape = 'u8[65536]{0}', space=vmem, size = 0x10000, scoped, tag = 'input window, operand 3, single buffered']
    #allocation9 [shape = 'u8[65536]{0}', space=vmem, size = 0x10000, scoped, tag = 'output window, operand 0, single buffered']
    %9 = vsyncpa [#allocation4], 0
    %10 = vsyncpa [#allocation7], 0
    %11 = vsyncpa [#allocation5], 0
    // Predicated region
    $region2: #{tpu_custom_call.1} parent=1 // pred_check
      _
    $region3: #{tpu_custom_call.1} parent=1 // pred_check_branch
      %13 = sbr.rel (0) target = $region5
    $region4: #{tpu_custom_call.1} parent=1 // pred_region
      %s15 = ssub.s32 2048, 2048
      %16 = vsyncadd [#allocation4], %s15
      %s17 = sshll.u32 [#allocation3], 4
      %s18 = int_to_ptr.vmem [resolvable:$true] %s17
      %23 = dma.hbm_to_vmem [thread:$0]  %s0, 2048, %s18, [#allocation4], 128, 128, 8
    $region5: #{tpu_custom_call.1} parent=1 // pred_fallthru
      _
    // Predicated region
    $region6: #{tpu_custom_call.1} parent=1 // pred_check
      _
    $region7: #{tpu_custom_call.1} parent=1 // pred_check_branch
      %25 = sbr.rel (0) target = $region9
    $region8: #{tpu_custom_call.1} parent=1 // pred_region
      %s27 = ssub.s32 2048, 2048
      %28 = vsyncadd [#allocation7], %s27
      %s29 = sshll.u32 [#allocation6], 4
      %s30 = int_to_ptr.vmem [resolvable:$true] %s29
      %35 = dma.hbm_to_vmem [thread:$0]  %s1, 2048, %s30, [#allocation7], 128, 128, 8
    $region9: #{tpu_custom_call.1} parent=1 // pred_fallthru
      _
    // Predicated region
    $region10: #{tpu_custom_call.1} parent=1 // pred_check
      _
    $region11: #{tpu_custom_call.1} parent=1 // pred_check_branch
      %37 = sbr.rel (0) target = $region13
    $region12: #{tpu_custom_call.1} parent=1 // pred_region
      _
    $region13: #{tpu_custom_call.1} parent=1 // pred_fallthru
      _
    // Predicated region
    $region14: #{tpu_custom_call.1} parent=1 // pred_check
      _
    $region15: #{tpu_custom_call.1} parent=1 // pred_check_branch
      %39 = sbr.rel (0) target = $region17
    $region16: #{tpu_custom_call.1} parent=1 // pred_region
      %s41 = ssub.s32 2048, 2048
      %42 = vsyncadd [#allocation7], %s41
      %s43 = sshll.u32 [#allocation8], 4
      %s44 = int_to_ptr.vmem [resolvable:$true] %s43
      %49 = dma.hbm_to_vmem [thread:$0]  %s3, 2048, %s44, [#allocation7], 128, 128, 8
    $region17: #{tpu_custom_call.1} parent=1 // pred_fallthru
      _
    // Predicated region
    $region18: #{tpu_custom_call.1} parent=1 // pred_check
      _
    $region19: #{tpu_custom_call.1} parent=1 // pred_check_branch
      %51 = sbr.rel (0) target = $region21
    $region20: #{tpu_custom_call.1} parent=1 // pred_region
      %52 = dma.done [#allocation4], 2048
    $region21: #{tpu_custom_call.1} parent=1 // pred_fallthru
      _
    // Predicated region
    $region22: #{tpu_custom_call.1} parent=1 // pred_check
      _
    $region23: #{tpu_custom_call.1} parent=1 // pred_check_branch
      %54 = sbr.rel (0) target = $region25
    $region24: #{tpu_custom_call.1} parent=1 // pred_region
      %55 = dma.done [#allocation7], 2048
    $region25: #{tpu_custom_call.1} parent=1 // pred_fallthru
      _
    // Predicated region
    $region26: #{tpu_custom_call.1} parent=1 // pred_check
      _
    $region27: #{tpu_custom_call.1} parent=1 // pred_check_branch
      %57 = sbr.rel (0) target = $region29
    $region28: #{tpu_custom_call.1} parent=1 // pred_region
      %58 = dma.done [#allocation7], 2048
    $region29: #{tpu_custom_call.1} parent=1 // pred_fallthru
      _
    %p59 = scmp.eq.s32.totalorder 0, 0
    // Predicated region
    $region30: #{tpu_custom_call.1} parent=1 // pred_check
      %p60 = pneg %p59
    $region31: #{tpu_custom_call.1} parent=1 // pred_check_branch
      %62 = sbr.rel (%p60) target = $region33
    $region32: #{tpu_custom_call.1} parent=1 // pred_region
      %63 = vst [vmem:[#allocation2] sm:$0xff] 0.0
      %64 = vst [vmem:[#allocation2 + $0x8] sm:$0xff] 0.0
      %65 = vst [vmem:[#allocation2 + $0x10] sm:$0xff] 0.0
      %66 = vst [vmem:[#allocation2 + $0x18] sm:$0xff] 0.0
      %67 = vst [vmem:[#allocation2 + $0x20] sm:$0xff] 0.0
      %68 = vst [vmem:[#allocation2 + $0x28] sm:$0xff] 0.0
      %69 = vst [vmem:[#allocation2 + $0x30] sm:$0xff] 0.0
      %70 = vst [vmem:[#allocation2 + $0x38] sm:$0xff] 0.0
      %71 = vst [vmem:[#allocation2 + $0x40] sm:$0xff] 0.0
      %72 = vst [vmem:[#allocation2 + $0x48] sm:$0xff] 0.0
      %73 = vst [vmem:[#allocation2 + $0x50] sm:$0xff] 0.0
      %74 = vst [vmem:[#allocation2 + $0x58] sm:$0xff] 0.0
      %75 = vst [vmem:[#allocation2 + $0x60] sm:$0xff] 0.0
      %76 = vst [vmem:[#allocation2 + $0x68] sm:$0xff] 0.0
      %77 = vst [vmem:[#allocation2 + $0x70] sm:$0xff] 0.0
      %78 = vst [vmem:[#allocation2 + $0x78] sm:$0xff] 0.0
    $region33: #{tpu_custom_call.1} parent=1 // pred_fallthru
      _
    %v79 = vld [vmem:[#allocation2] sm:$0xff]
    %v80 = vld [vmem:[#allocation2 + $0x8] sm:$0xff]
    %v81 = vld [vmem:[#allocation2 + $0x10] sm:$0xff]
    %v82 = vld [vmem:[#allocation2 + $0x18] sm:$0xff]
    %v83 = vld [vmem:[#allocation2 + $0x20] sm:$0xff]
    %v84 = vld [vmem:[#allocation2 + $0x28] sm:$0xff]
    %v85 = vld [vmem:[#allocation2 + $0x30] sm:$0xff]
    %v86 = vld [vmem:[#allocation2 + $0x38] sm:$0xff]
    %v87 = vld [vmem:[#allocation2 + $0x40] sm:$0xff]
    %v88 = vld [vmem:[#allocation2 + $0x48] sm:$0xff]
    %v89 = vld [vmem:[#allocation2 + $0x50] sm:$0xff]
    %v90 = vld [vmem:[#allocation2 + $0x58] sm:$0xff]
    %v91 = vld [vmem:[#allocation2 + $0x60] sm:$0xff]
    %v92 = vld [vmem:[#allocation2 + $0x68] sm:$0xff]
    %v93 = vld [vmem:[#allocation2 + $0x70] sm:$0xff]
    %v94 = vld [vmem:[#allocation2 + $0x78] sm:$0xff]
    %v95 = vld [vmem:[#allocation3] sm:$0xff]
    %v96 = vld [vmem:[#allocation3 + $0x8] sm:$0xff]
    %v97 = vld [vmem:[#allocation3 + $0x10] sm:$0xff]
    %v98 = vld [vmem:[#allocation3 + $0x18] sm:$0xff]
    %v99 = vld [vmem:[#allocation3 + $0x20] sm:$0xff]
    %v100 = vld [vmem:[#allocation3 + $0x28] sm:$0xff]
    %v101 = vld [vmem:[#allocation3 + $0x30] sm:$0xff]
    %v102 = vld [vmem:[#allocation3 + $0x38] sm:$0xff]
    %v103 = vld [vmem:[#allocation3 + $0x40] sm:$0xff]
    %v104 = vld [vmem:[#allocation3 + $0x48] sm:$0xff]
    %v105 = vld [vmem:[#allocation3 + $0x50] sm:$0xff]
    %v106 = vld [vmem:[#allocation3 + $0x58] sm:$0xff]
    %v107 = vld [vmem:[#allocation3 + $0x60] sm:$0xff]
    %v108 = vld [vmem:[#allocation3 + $0x68] sm:$0xff]
    %v109 = vld [vmem:[#allocation3 + $0x70] sm:$0xff]
    %v110 = vld [vmem:[#allocation3 + $0x78] sm:$0xff]
    %v111 = vld [vmem:[#allocation6] sm:$0xff]
    %v112 = vld [vmem:[#allocation6 + $0x8] sm:$0xff]
    %v113 = vld [vmem:[#allocation6 + $0x10] sm:$0xff]
    %v114 = vld [vmem:[#allocation6 + $0x18] sm:$0xff]
    %v115 = vld [vmem:[#allocation6 + $0x20] sm:$0xff]
    %v116 = vld [vmem:[#allocation6 + $0x28] sm:$0xff]
    %v117 = vld [vmem:[#allocation6 + $0x30] sm:$0xff]
    %v118 = vld [vmem:[#allocation6 + $0x38] sm:$0xff]
    %v119 = vld [vmem:[#allocation6 + $0x40] sm:$0xff]
    %v120 = vld [vmem:[#allocation6 + $0x48] sm:$0xff]
    %v121 = vld [vmem:[#allocation6 + $0x50] sm:$0xff]
    %v122 = vld [vmem:[#allocation6 + $0x58] sm:$0xff]
    %v123 = vld [vmem:[#allocation6 + $0x60] sm:$0xff]
    %v124 = vld [vmem:[#allocation6 + $0x68] sm:$0xff]
    %v125 = vld [vmem:[#allocation6 + $0x70] sm:$0xff]
    %v126 = vld [vmem:[#allocation6 + $0x78] sm:$0xff]
    %127 = vmatprep.subr.mxu0 0.0
    %128 = vmatpush1.msra.mxu0 %v111
    %129 = vmatprep.subr.mxu0 0.0
    %130 = vmatpush1.msra.mxu0 %v112
    %131 = vmatprep.subr.mxu0 0.0
    %132 = vmatpush1.msra.mxu0 %v113
    %133 = vmatprep.subr.mxu0 0.0
    %134 = vmatpush1.msra.mxu0 %v114
    %135 = vmatprep.subr.mxu0 0.0
    %136 = vmatpush1.msra.mxu0 %v115
    %137 = vmatprep.subr.mxu0 0.0
    %138 = vmatpush1.msra.mxu0 %v116
    %139 = vmatprep.subr.mxu0 0.0
    %140 = vmatpush1.msra.mxu0 %v117
    %141 = vmatprep.subr.mxu0 0.0
    %142 = vmatpush1.msra.mxu0 %v118
    %143 = vmatprep.subr.mxu0 0.0
    %144 = vmatpush1.msra.mxu0 %v119
    %145 = vmatprep.subr.mxu0 0.0
    %146 = vmatpush1.msra.mxu0 %v120
    %147 = vmatprep.subr.mxu0 0.0
    %148 = vmatpush1.msra.mxu0 %v121
    %149 = vmatprep.subr.mxu0 0.0
    %150 = vmatpush1.msra.mxu0 %v122
    %151 = vmatprep.subr.mxu0 0.0
    %152 = vmatpush1.msra.mxu0 %v123
    %153 = vmatprep.subr.mxu0 0.0
    %154 = vmatpush1.msra.mxu0 %v124
    %155 = vmatprep.subr.mxu0 0.0
    %156 = vmatpush1.msra.mxu0 %v125
    %157 = vmatprep.subr.mxu0 0.0
    %158 = vmatpush1.msra.mxu0 %v126
    %159 = vmatprep.subr.mxu0 0.0
    %160 = vmatpush1.msra.mxu0 0.0
    %161 = vmatprep.subr.mxu0 0.0
    %162 = vmatpush1.msra.mxu0 0.0
    %163 = vmatprep.subr.mxu0 0.0
    %164 = vmatpush1.msra.mxu0 0.0
    %165 = vmatprep.subr.mxu0 0.0
    %166 = vmatpush1.msra.mxu0 0.0
    %167 = vmatprep.subr.mxu0 0.0
    %168 = vmatpush1.msra.mxu0 0.0
    %169 = vmatprep.subr.mxu0 0.0
    %170 = vmatpush1.msra.mxu0 0.0
    %171 = vmatprep.subr.mxu0 0.0
    %172 = vmatpush1.msra.mxu0 0.0
    %173 = vmatprep.subr.mxu0 0.0
    %174 = vmatpush1.msra.mxu0 0.0
    %175 = vmatprep.subr.mxu0 0.0
    %176 = vmatpush1.msra.mxu0 0.0
    %177 = vmatprep.subr.mxu0 0.0
    %178 = vmatpush1.msra.mxu0 0.0
    %179 = vmatprep.subr.mxu0 0.0
    %180 = vmatpush1.msra.mxu0 0.0
    %181 = vmatprep.subr.mxu0 0.0
    %182 = vmatpush1.msra.mxu0 0.0
    %183 = vmatprep.subr.mxu0 0.0
    %184 = vmatpush1.msra.mxu0 0.0
    %185 = vmatprep.subr.mxu0 0.0
    %186 = vmatpush1.msra.mxu0 0.0
    %187 = vmatprep.subr.mxu0 0.0
    %188 = vmatpush1.msra.mxu0 0.0
    %189 = vmatprep.subr.mxu0 0.0
    %190 = vmatpush1.msra.mxu0 0.0
    %191 = vmatprep.mubr.f32.mxu0 0.0
    %192 = vmatmul.mubr.f32.gmra.mrb[0].mxu0 %v95
    %v193 = vpop.f32.mrb[0].mxu0
    %v194 = vadd.f32 0.0, %v193
    %v195 = vpop.f32.mrb[0].mxu0
    %196 = vmatprep.mubr.f32.mxu0 0.0
    %197 = vmatmul.mubr.f32.gmra.mrb[0].mxu0 %v96
    %v198 = vpop.f32.mrb[0].mxu0
    %v199 = vadd.f32 0.0, %v198
    %v200 = vpop.f32.mrb[0].mxu0
    %201 = vmatprep.mubr.f32.mxu0 0.0
    %202 = vmatmul.mubr.f32.gmra.mrb[0].mxu0 %v97
    %v203 = vpop.f32.mrb[0].mxu0
    %v204 = vadd.f32 0.0, %v203
    %v205 = vpop.f32.mrb[0].mxu0
    %206 = vmatprep.mubr.f32.mxu0 0.0
    %207 = vmatmul.mubr.f32.gmra.mrb[0].mxu0 %v98
    %v208 = vpop.f32.mrb[0].mxu0
    %v209 = vadd.f32 0.0, %v208
    %v210 = vpop.f32.mrb[0].mxu0
    %211 = vmatprep.mubr.f32.mxu0 0.0
    %212 = vmatmul.mubr.f32.gmra.mrb[0].mxu0 %v99
    %v213 = vpop.f32.mrb[0].mxu0
    %v214 = vadd.f32 0.0, %v213
    %v215 = vpop.f32.mrb[0].mxu0
    %216 = vmatprep.mubr.f32.mxu0 0.0
    %217 = vmatmul.mubr.f32.gmra.mrb[0].mxu0 %v100
    %v218 = vpop.f32.mrb[0].mxu0
    %v219 = vadd.f32 0.0, %v218
    %v220 = vpop.f32.mrb[0].mxu0
    %221 = vmatprep.mubr.f32.mxu0 0.0
    %222 = vmatmul.mubr.f32.gmra.mrb[0].mxu0 %v101
    %v223 = vpop.f32.mrb[0].mxu0
    %v224 = vadd.f32 0.0, %v223
    %v225 = vpop.f32.mrb[0].mxu0
    %226 = vmatprep.mubr.f32.mxu0 0.0
    %227 = vmatmul.mubr.f32.gmra.mrb[0].mxu0 %v102
    %v228 = vpop.f32.mrb[0].mxu0
    %v229 = vadd.f32 0.0, %v228
    %v230 = vpop.f32.mrb[0].mxu0
    %231 = vmatprep.mubr.f32.mxu0 0.0
    %232 = vmatmul.mubr.f32.gmra.mrb[0].mxu0 %v103
    %v233 = vpop.f32.mrb[0].mxu0
    %v234 = vadd.f32 0.0, %v233
    %v235 = vpop.f32.mrb[0].mxu0
    %236 = vmatprep.mubr.f32.mxu0 0.0
    %237 = vmatmul.mubr.f32.gmra.mrb[0].mxu0 %v104
    %v238 = vpop.f32.mrb[0].mxu0
    %v239 = vadd.f32 0.0, %v238
    %v240 = vpop.f32.mrb[0].mxu0
    %241 = vmatprep.mubr.f32.mxu0 0.0
    %242 = vmatmul.mubr.f32.gmra.mrb[0].mxu0 %v105
    %v243 = vpop.f32.mrb[0].mxu0
    %v244 = vadd.f32 0.0, %v243
    %v245 = vpop.f32.mrb[0].mxu0
    %246 = vmatprep.mubr.f32.mxu0 0.0
    %247 = vmatmul.mubr.f32.gmra.mrb[0].mxu0 %v106
    %v248 = vpop.f32.mrb[0].mxu0
    %v249 = vadd.f32 0.0, %v248
    %v250 = vpop.f32.mrb[0].mxu0
    %251 = vmatprep.mubr.f32.mxu0 0.0
    %252 = vmatmul.mubr.f32.gmra.mrb[0].mxu0 %v107
    %v253 = vpop.f32.mrb[0].mxu0
    %v254 = vadd.f32 0.0, %v253
    %v255 = vpop.f32.mrb[0].mxu0
    %256 = vmatprep.mubr.f32.mxu0 0.0
    %257 = vmatmul.mubr.f32.gmra.mrb[0].mxu0 %v108
    %v258 = vpop.f32.mrb[0].mxu0
    %v259 = vadd.f32 0.0, %v258
    %v260 = vpop.f32.mrb[0].mxu0
    %261 = vmatprep.mubr.f32.mxu0 0.0
    %262 = vmatmul.mubr.f32.gmra.mrb[0].mxu0 %v109
    %v263 = vpop.f32.mrb[0].mxu0
    %v264 = vadd.f32 0.0, %v263
    %v265 = vpop.f32.mrb[0].mxu0
    %266 = vmatprep.mubr.f32.mxu0 0.0
    %267 = vmatmul.mubr.f32.gmra.mrb[0].mxu0 %v110
    %v268 = vpop.f32.mrb[0].mxu0
    %v269 = vadd.f32 0.0, %v268
    %v270 = vpop.f32.mrb[0].mxu0
    %271 = vdwg.mxu0
    %v272 = vadd.f32 %v79, %v194
    %v273 = vadd.f32 %v80, %v199
    %v274 = vadd.f32 %v81, %v204
    %v275 = vadd.f32 %v82, %v209
    %v276 = vadd.f32 %v83, %v214
    %v277 = vadd.f32 %v84, %v219
    %v278 = vadd.f32 %v85, %v224
    %v279 = vadd.f32 %v86, %v229
    %v280 = vadd.f32 %v87, %v234
    %v281 = vadd.f32 %v88, %v239
    %v282 = vadd.f32 %v89, %v244
    %v283 = vadd.f32 %v90, %v249
    %v284 = vadd.f32 %v91, %v254
    %v285 = vadd.f32 %v92, %v259
    %v286 = vadd.f32 %v93, %v264
    %v287 = vadd.f32 %v94, %v269
    %288 = vst [vmem:[#allocation2] sm:$0xff] %v272
    %289 = vst [vmem:[#allocation2 + $0x8] sm:$0xff] %v273
    %290 = vst [vmem:[#allocation2 + $0x10] sm:$0xff] %v274
    %291 = vst [vmem:[#allocation2 + $0x18] sm:$0xff] %v275
    %292 = vst [vmem:[#allocation2 + $0x20] sm:$0xff] %v276
    %293 = vst [vmem:[#allocation2 + $0x28] sm:$0xff] %v277
    %294 = vst [vmem:[#allocation2 + $0x30] sm:$0xff] %v278
    %295 = vst [vmem:[#allocation2 + $0x38] sm:$0xff] %v279
    %296 = vst [vmem:[#allocation2 + $0x40] sm:$0xff] %v280
    %297 = vst [vmem:[#allocation2 + $0x48] sm:$0xff] %v281
    %298 = vst [vmem:[#allocation2 + $0x50] sm:$0xff] %v282
    %299 = vst [vmem:[#allocation2 + $0x58] sm:$0xff] %v283
    %300 = vst [vmem:[#allocation2 + $0x60] sm:$0xff] %v284
    %301 = vst [vmem:[#allocation2 + $0x68] sm:$0xff] %v285
    %302 = vst [vmem:[#allocation2 + $0x70] sm:$0xff] %v286
    %303 = vst [vmem:[#allocation2 + $0x78] sm:$0xff] %v287
    // Predicated region
    $region34: #{tpu_custom_call.1} parent=1 // pred_check
      %p304 = pneg %p59
    $region35: #{tpu_custom_call.1} parent=1 // pred_check_branch
      %306 = sbr.rel (%p304) target = $region37
    $region36: #{tpu_custom_call.1} parent=1 // pred_region
      %v307 = vld [vmem:[#allocation8] sm:$0xff]
      %v308 = vld [vmem:[#allocation8 + $0x8] sm:$0xff]
      %v309 = vld [vmem:[#allocation8 + $0x10] sm:$0xff]
      %v310 = vld [vmem:[#allocation8 + $0x18] sm:$0xff]
      %v311 = vld [vmem:[#allocation8 + $0x20] sm:$0xff]
      %v312 = vld [vmem:[#allocation8 + $0x28] sm:$0xff]
      %v313 = vld [vmem:[#allocation8 + $0x30] sm:$0xff]
      %v314 = vld [vmem:[#allocation8 + $0x38] sm:$0xff]
      %v315 = vld [vmem:[#allocation8 + $0x40] sm:$0xff]
      %v316 = vld [vmem:[#allocation8 + $0x48] sm:$0xff]
      %v317 = vld [vmem:[#allocation8 + $0x50] sm:$0xff]
      %v318 = vld [vmem:[#allocation8 + $0x58] sm:$0xff]
      %v319 = vld [vmem:[#allocation8 + $0x60] sm:$0xff]
      %v320 = vld [vmem:[#allocation8 + $0x68] sm:$0xff]
      %v321 = vld [vmem:[#allocation8 + $0x70] sm:$0xff]
      %v322 = vld [vmem:[#allocation8 + $0x78] sm:$0xff]
      %v323 = vld [vmem:[%s2] sm:$0x1]
      %v324 = vld [vmem:[#allocation2] sm:$0xff]
      %v325 = vld [vmem:[#allocation2 + $0x8] sm:$0xff]
      %v326 = vld [vmem:[#allocation2 + $0x10] sm:$0xff]
      %v327 = vld [vmem:[#allocation2 + $0x18] sm:$0xff]
      %v328 = vld [vmem:[#allocation2 + $0x20] sm:$0xff]
      %v329 = vld [vmem:[#allocation2 + $0x28] sm:$0xff]
      %v330 = vld [vmem:[#allocation2 + $0x30] sm:$0xff]
      %v331 = vld [vmem:[#allocation2 + $0x38] sm:$0xff]
      %v332 = vld [vmem:[#allocation2 + $0x40] sm:$0xff]
      %v333 = vld [vmem:[#allocation2 + $0x48] sm:$0xff]
      %v334 = vld [vmem:[#allocation2 + $0x50] sm:$0xff]
      %v335 = vld [vmem:[#allocation2 + $0x58] sm:$0xff]
      %v336 = vld [vmem:[#allocation2 + $0x60] sm:$0xff]
      %v337 = vld [vmem:[#allocation2 + $0x68] sm:$0xff]
      %v338 = vld [vmem:[#allocation2 + $0x70] sm:$0xff]
      %v339 = vld [vmem:[#allocation2 + $0x78] sm:$0xff]
      %v341 = vlaneseq
      %v342 = vshrl.u32 %v341, 7
      %v343 = vsub.s32 0, %v342
      %v344 = vrot.slane %v323, %v343
      %v346 = vmul.f32 %v344, %v324
      %v347 = vmul.f32 %v344, %v325
      %v348 = vmul.f32 %v344, %v326
      %v349 = vmul.f32 %v344, %v327
      %v350 = vmul.f32 %v344, %v328
      %v351 = vmul.f32 %v344, %v329
      %v352 = vmul.f32 %v344, %v330
      %v353 = vmul.f32 %v344, %v331
      %v354 = vmul.f32 %v344, %v332
      %v355 = vmul.f32 %v344, %v333
      %v356 = vmul.f32 %v344, %v334
      %v357 = vmul.f32 %v344, %v335
      %v358 = vmul.f32 %v344, %v336
      %v359 = vmul.f32 %v344, %v337
      %v360 = vmul.f32 %v344, %v338
      %v361 = vmul.f32 %v344, %v339
      %v362 = vmul.f32 %v346, 0.1
      %v363 = vmul.f32 %v347, 0.1
      %v364 = vmul.f32 %v348, 0.1
      %v365 = vmul.f32 %v349, 0.1
      %v366 = vmul.f32 %v350, 0.1
      %v367 = vmul.f32 %v351, 0.1
      %v368 = vmul.f32 %v352, 0.1
      %v369 = vmul.f32 %v353, 0.1
      %v370 = vmul.f32 %v354, 0.1
      %v371 = vmul.f32 %v355, 0.1
      %v372 = vmul.f32 %v356, 0.1
      %v373 = vmul.f32 %v357, 0.1
      %v374 = vmul.f32 %v358, 0.1
      %v375 = vmul.f32 %v359, 0.1
      %v376 = vmul.f32 %v360, 0.1
      %v377 = vmul.f32 %v361, 0.1
      %v378 = vsub.f32 %v307, %v362
      %v379 = vsub.f32 %v308, %v363
      %v380 = vsub.f32 %v309, %v364
      %v381 = vsub.f32 %v310, %v365
      %v382 = vsub.f32 %v311, %v366
      %v383 = vsub.f32 %v312, %v367
      %v384 = vsub.f32 %v313, %v368
      %v385 = vsub.f32 %v314, %v369
      %v386 = vsub.f32 %v315, %v370
      %v387 = vsub.f32 %v316, %v371
      %v388 = vsub.f32 %v317, %v372
      %v389 = vsub.f32 %v318, %v373
      %v390 = vsub.f32 %v319, %v374
      %v391 = vsub.f32 %v320, %v375
      %v392 = vsub.f32 %v321, %v376
      %v393 = vsub.f32 %v322, %v377
      %v394 = vmax.f32 %v378, 0.0
      %v395 = vmax.f32 %v379, 0.0
      %v396 = vmax.f32 %v380, 0.0
      %v397 = vmax.f32 %v381, 0.0
      %v398 = vmax.f32 %v382, 0.0
      %v399 = vmax.f32 %v383, 0.0
      %v400 = vmax.f32 %v384, 0.0
      %v401 = vmax.f32 %v385, 0.0
      %v402 = vmax.f32 %v386, 0.0
      %v403 = vmax.f32 %v387, 0.0
      %v404 = vmax.f32 %v388, 0.0
      %v405 = vmax.f32 %v389, 0.0
      %v406 = vmax.f32 %v390, 0.0
      %v407 = vmax.f32 %v391, 0.0
      %v408 = vmax.f32 %v392, 0.0
      %v409 = vmax.f32 %v393, 0.0
      %410 = vst [vmem:[#allocation9] sm:$0xff] %v394
      %411 = vst [vmem:[#allocation9 + $0x8] sm:$0xff] %v395
      %412 = vst [vmem:[#allocation9 + $0x10] sm:$0xff] %v396
      %413 = vst [vmem:[#allocation9 + $0x18] sm:$0xff] %v397
      %414 = vst [vmem:[#allocation9 + $0x20] sm:$0xff] %v398
      %415 = vst [vmem:[#allocation9 + $0x28] sm:$0xff] %v399
      %416 = vst [vmem:[#allocation9 + $0x30] sm:$0xff] %v400
      %417 = vst [vmem:[#allocation9 + $0x38] sm:$0xff] %v401
      %418 = vst [vmem:[#allocation9 + $0x40] sm:$0xff] %v402
      %419 = vst [vmem:[#allocation9 + $0x48] sm:$0xff] %v403
      %420 = vst [vmem:[#allocation9 + $0x50] sm:$0xff] %v404
      %421 = vst [vmem:[#allocation9 + $0x58] sm:$0xff] %v405
      %422 = vst [vmem:[#allocation9 + $0x60] sm:$0xff] %v406
      %423 = vst [vmem:[#allocation9 + $0x68] sm:$0xff] %v407
      %424 = vst [vmem:[#allocation9 + $0x70] sm:$0xff] %v408
      %425 = vst [vmem:[#allocation9 + $0x78] sm:$0xff] %v409
    $region37: #{tpu_custom_call.1} parent=1 // pred_fallthru
      _
    // Predicated region
    $region38: #{tpu_custom_call.1} parent=1 // pred_check
      _
    $region39: #{tpu_custom_call.1} parent=1 // pred_check_branch
      %427 = sbr.rel (0) target = $region41
    $region40: #{tpu_custom_call.1} parent=1 // pred_region
      %s429 = ssub.s32 2048, 2048
      %430 = vsyncadd [#allocation5], %s429
      %s431 = sshll.u32 [#allocation9], 4
      %s432 = int_to_ptr.vmem [resolvable:$true] %s431
      %437 = dma.vmem_to_hbm [thread:$0]  %s432, 2048, %s4, [#allocation5], 128, 128, 8
    $region41: #{tpu_custom_call.1} parent=1 // pred_fallthru
      _
    // Predicated region
    $region42: #{tpu_custom_call.1} parent=1 // pred_check
      _
    $region43: #{tpu_custom_call.1} parent=1 // pred_check_branch
      %439 = sbr.rel (0) target = $region45
    $region44: #{tpu_custom_call.1} parent=1 // pred_region
      %440 = dma.done [#allocation5], 2048
    $region45: #{tpu_custom_call.1} parent=1 // pred_fallthru
      _
    %441 = vsyncpa [#allocation4], 1
    %442 = vsyncpa [#allocation7], 1
    %443 = vsyncpa [#allocation5], 1

</llo_original>
